<compile_context>
chip_gen: v5e
topology: v5e:2x2
jax: 0.10.0
libtpu: 0.0.40
codegen_flags: <defaults>
</compile_context>

<pallas_src>
import jax
import jax.numpy as jnp
from jax.experimental import pallas as pl
from jax.experimental.pallas import tpu as pltpu

SLOPE = 0.0001  # leaky_relu negative slope used in the reference forward pass
LANE = 128      # TPU vreg lane width


def _round_up(n, m):
    return (n + m - 1) // m * m


def _cdiv(a, b):
    return (a + b - 1) // b


# ----------------------------------------------------------------------------
# Kernel: one batch tile of the whole 6-layer MLP, all weights VMEM-resident.
# ----------------------------------------------------------------------------
def _decoder_kernel(zy_ref, w7_ref, w_ref, b_ref, out_ref):
    """
    zy_ref : [TB, zy_dim]  bf16   concat(z, y), concatenated in the wrapper
    w7_ref : [zy_dim, D]   bf16   fc7 weight
    w_ref  : [5, D, D]     bf16   fc8..fc12 weights, zero-padded to uniform D
    b_ref  : [6, D]        f32    fc7..fc12 biases, zero-padded
    out_ref: [TB, D]       f32    sigmoid(logits); padded cols sliced off outside
    """

    def leaky(v):
        return jnp.where(v >= 0, v, SLOPE * v)

    # fc7: single matmul on the pre-fused (z||y) bf16 input.
    h = jnp.dot(zy_ref[...], w7_ref[...],
                preferred_element_type=jnp.float32) + b_ref[0:1, :]
    h = leaky(h)                                 # dropout_2 == identity (eval)

    # fc8 .. fc11 (+ leaky_relu; dropout identity) — statically unrolled.
    for i in range(4):
        h = jnp.dot(h.astype(jnp.bfloat16), w_ref[i],
                    preferred_element_type=jnp.float32) + b_ref[i + 1:i + 2, :]
        h = leaky(h)

    # fc12 + sigmoid
    logits = jnp.dot(h.astype(jnp.bfloat16), w_ref[4],
                     preferred_element_type=jnp.float32) + b_ref[5:6, :]
    out_ref[...] = jax.nn.sigmoid(logits).astype(out_ref.dtype)


# ----------------------------------------------------------------------------
# Param packing: pad widths to multiples of 128, collapse inputs to 3 arrays.
# ----------------------------------------------------------------------------
def pack_params(params):
    names = ("7", "8", "9", "10", "11", "12")
    ws = [params["w" + n] for n in names]                 # [in, out] f32
    bs = [params["b" + n].reshape(-1) for n in names]
    x_dim = ws[-1].shape[1]
    D = max(_round_up(w.shape[1], LANE) for w in ws)      # uniform padded width

    def pad_to(a, r, c):
        return jnp.pad(a, ((0, r - a.shape[0]), (0, c - a.shape[1])))

    w7 = jnp.pad(ws[0], ((0, 0), (0, D - ws[0].shape[1]))).astype(jnp.bfloat16)
    w_pack = jnp.stack([pad_to(w, D, D) for w in ws[1:]]).astype(jnp.bfloat16)
    b_pack = jnp.stack([jnp.pad(b, (0, D - b.shape[0])) for b in bs]
                       ).astype(jnp.float32)
    return {"w7": w7, "w_pack": w_pack, "b_pack": b_pack, "x_dim": int(x_dim)}


# ----------------------------------------------------------------------------
# Wrapper: fused concat, balanced batch grid, resident weights, slice to x_dim.
# ----------------------------------------------------------------------------
def decoder_forward(z, y, packed):
    w7, w_pack, b_pack = packed["w7"], packed["w_pack"], packed["b_pack"]
    x_dim = packed["x_dim"]
    D = w_pack.shape[-1]

    z = z.reshape(-1, z.shape[1])
    y = y.reshape(-1, y.shape[1])
    # Concat fused once here (one cheap bf16 HBM write) -> single fc7 matmul
    # in-kernel and no in-kernel input casts.
    zy = jnp.concatenate([z, y], axis=1).astype(jnp.bfloat16)
    B, zy_dim = zy.shape

    # Batch tiling: balanced tiles (bounded padding waste), tiles <= MAX_TILE,
    # and an even number (>=2) of grid steps for B > 64 so v7x's two
    # TensorCores both get work via dimension_semantics=("parallel",).
    MAX_TILE = 512           # review: sweep 256 vs 512 per chip if it matters
    if B <= 64:
        n_steps = 1
        tile_b = max(8, _round_up(B, 8))
    else:
        n_steps = max(2, 2 * _cdiv(_cdiv(B, MAX_TILE), 2))
        tile_b = _round_up(_cdiv(B, n_steps), 16)   # 16: bf16 sublane packing
    Bp = tile_b * n_steps
    if Bp != B:
        zy = jnp.pad(zy, ((0, Bp - B), (0, 0)))

    # Resident weights: constant index_maps keep them in VMEM across steps.
    # Once D scales up, single-buffer them so they don't cost 2x against
    # v7x's halved (64 MiB) VMEM.
    res_kw = {"pipeline_mode": pl.Buffered(1)} if D >= 512 else {}

    param_bytes = int(w7.size) * 2 + int(w_pack.size) * 2 + int(b_pack.size) * 4
    vmem_limit = int(min(max(2 * param_bytes + 16 * tile_b * D * 4, 32 << 20),
                         56 << 20))   # headroom, below v7x 64 MiB physical

    out = pl.pallas_call(
        _decoder_kernel,
        out_shape=jax.ShapeDtypeStruct((Bp, D), jnp.float32),
        grid=(n_steps,),
        in_specs=[
            pl.BlockSpec((tile_b, zy_dim), lambda i: (i, 0)),
            pl.BlockSpec(w7.shape, lambda i: (0, 0), **res_kw),       # resident
            pl.BlockSpec(w_pack.shape, lambda i: (0, 0, 0), **res_kw),  # resident
            pl.BlockSpec(b_pack.shape, lambda i: (0, 0), **res_kw),   # resident
        ],
        out_specs=pl.BlockSpec((tile_b, D), lambda i: (i, 0)),
        compiler_params=pltpu.CompilerParams(
            dimension_semantics=("parallel",),       # shards over 2 TCs on v7x
            vmem_limit_bytes=vmem_limit),
    )(zy, w7, w_pack, b_pack)

    return out[:B, :x_dim]


# ----------------------------------------------------------------------------
# Init + pure-JAX reference (mirrors the kernel's bf16 weight/activation casts)
# ----------------------------------------------------------------------------
def init_params(key, x_dim, h_dim1, h_dim2, h_dim3, h_dim4, h_dim5, y_dim, z_dim):
    """Deterministic init mirroring torch.nn.Linear default U(-1/sqrt(fan_in), ...)."""
    dims = [
        ("7", z_dim + y_dim, h_dim5),
        ("8", h_dim5, h_dim4),
        ("9", h_dim4, h_dim3),
        ("10", h_dim3, h_dim2),
        ("11", h_dim2, h_dim1),
        ("12", h_dim1, x_dim),
    ]
    params = {}
    for name, fan_in, fan_out in dims:
        key, kw, kb = jax.random.split(key, 3)
        bound = 1.0 / jnp.sqrt(float(fan_in))
        # stored as [in, out] so the kernel computes h @ W
        params["w" + name] = jax.random.uniform(
            kw, (fan_in, fan_out), jnp.float32, -bound, bound)
        params["b" + name] = jax.random.uniform(
            kb, (1, fan_out), jnp.float32, -bound, bound)
    return params


def reference_forward(z, y, params):
    """Pure-JAX reference with the same bf16 operand / f32 accumulate scheme."""
    zy = jnp.concatenate(
        [z.reshape(-1, z.shape[1]), y.reshape(-1, y.shape[1])], axis=1)
    h = zy.astype(jnp.bfloat16)
    for n in ("7", "8", "9", "10", "11"):
        w = params["w" + n].astype(jnp.bfloat16)
        h = jnp.dot(h, w, preferred_element_type=jnp.float32) + params["b" + n]
        h = jnp.where(h >= 0, h, SLOPE * h)
        h = h.astype(jnp.bfloat16)
    w = params["w12"].astype(jnp.bfloat16)
    logits = jnp.dot(h, w, preferred_element_type=jnp.float32) + params["b12"]
    return jax.nn.sigmoid(logits)


if __name__ == "__main__":
    # Small deterministic config consistent with the module constructor.
    x_dim, h_dim1, h_dim2, h_dim3, h_dim4, h_dim5 = 32, 64, 64, 64, 64, 64
    y_dim, z_dim = 16, 16
    batch = 8

    root = jax.random.PRNGKey(0)
    k_param, k_z, k_y = jax.random.split(root, 3)
    params = init_params(k_param, x_dim, h_dim1, h_dim2, h_dim3, h_dim4, h_dim5,
                         y_dim, z_dim)
    packed = pack_params(params)

    z = jax.random.normal(k_z, (batch, z_dim), jnp.float32)
    y = jax.random.normal(k_y, (batch, y_dim), jnp.float32)

    out = decoder_forward(z, y, packed)
    jax.block_until_ready(out)

    ref = reference_forward(z, y, params)
    assert out.shape == (batch, x_dim)
    max_err = float(jnp.max(jnp.abs(out - ref)))
    # Reference mirrors the kernel's bf16 operand casts -> tight tolerance.
    assert max_err < 2e-3, f"mismatch vs JAX reference: max abs err {max_err}"

    print("KERNEL_OK")
</pallas_src>

<mosaic_0001>
module attributes {stable_mosaic.version = 11 : i64} {
  func.func @_decoder_kernel(%arg0: i32, %arg1: memref<8x32xbf16, #tpu.memory_space<vmem>>, %arg2: memref<32x128xbf16, #tpu.memory_space<vmem>>, %arg3: memref<5x128x128xbf16, #tpu.memory_space<vmem>>, %arg4: memref<6x128xf32, #tpu.memory_space<vmem>>, %arg5: memref<8x128xf32, #tpu.memory_space<vmem>>) attributes {dimension_semantics = [#tpu.dimension_semantics<parallel>], iteration_bounds = array<i64: 1>, scalar_prefetch = 0 : i64, scratch_operands = 0 : i64, tpu.core_type = #tpu.core_type<tc>, window_params = [{transform_indices = @transform_0, window_bounds = array<i64: 8, 32>}, {pipeline_mode = #tpu.pipeline_mode<synchronous>, transform_indices = @transform_1, window_bounds = array<i64: 32, 128>}, {pipeline_mode = #tpu.pipeline_mode<synchronous>, transform_indices = @transform_2, window_bounds = array<i64: 5, 128, 128>}, {pipeline_mode = #tpu.pipeline_mode<synchronous>, transform_indices = @transform_3, window_bounds = array<i64: 6, 128>}, {transform_indices = @transform_4, window_bounds = array<i64: 8, 128>}]} {
    %c0 = arith.constant 0 : index
    %c0_0 = arith.constant 0 : index
    %0 = vector.load %arg1[%c0, %c0_0] : memref<8x32xbf16, #tpu.memory_space<vmem>>, vector<8x32xbf16>
    %c0_1 = arith.constant 0 : index
    %c0_2 = arith.constant 0 : index
    %1 = vector.load %arg2[%c0_1, %c0_2] : memref<32x128xbf16, #tpu.memory_space<vmem>>, vector<32x128xbf16>
    %cst = arith.constant dense<0.000000e+00> : vector<8x128xf32>
    %2 = tpu.matmul %0, %1, %cst {dimension_numbers = #tpu.dot_dimension_numbers<[1], [0], [0], [1], [0, 0, 1, 1], [], []>} : vector<8x32xbf16>, vector<32x128xbf16>, vector<8x128xf32> -> vector<8x128xf32>
    %c0_3 = arith.constant 0 : index
    %c0_4 = arith.constant 0 : index
    %3 = vector.load %arg4[%c0_3, %c0_4] : memref<6x128xf32, #tpu.memory_space<vmem>>, vector<1x128xf32>
    %4 = vector.broadcast %3 : vector<1x128xf32> to vector<8x128xf32>
    %5 = arith.addf %2, %4 : vector<8x128xf32>
    %cst_5 = arith.constant 0.000000e+00 : f32
    %6 = vector.broadcast %cst_5 : f32 to vector<8x128xf32>
    %7 = arith.cmpf oge, %5, %6 : vector<8x128xf32>
    %cst_6 = arith.constant 9.99999974E-5 : f32
    %8 = vector.broadcast %cst_6 : f32 to vector<8x128xf32>
    %9 = arith.mulf %8, %5 : vector<8x128xf32>
    %10 = arith.select %7, %5, %9 : vector<8x128xi1>, vector<8x128xf32>
    %11 = arith.truncf %10 : vector<8x128xf32> to vector<8x128xbf16>
    %c0_7 = arith.constant 0 : index
    %c0_8 = arith.constant 0 : index
    %c0_9 = arith.constant 0 : index
    %12 = vector.load %arg3[%c0_7, %c0_8, %c0_9] : memref<5x128x128xbf16, #tpu.memory_space<vmem>>, vector<1x128x128xbf16>
    %13 = vector.shape_cast %12 : vector<1x128x128xbf16> to vector<128x128xbf16>
    %cst_10 = arith.constant dense<0.000000e+00> : vector<8x128xf32>
    %14 = tpu.matmul %11, %13, %cst_10 {dimension_numbers = #tpu.dot_dimension_numbers<[1], [0], [0], [1], [0, 0, 1, 1], [], []>} : vector<8x128xbf16>, vector<128x128xbf16>, vector<8x128xf32> -> vector<8x128xf32>
    %c1 = arith.constant 1 : index
    %c0_11 = arith.constant 0 : index
    %15 = vector.load %arg4[%c1, %c0_11] : memref<6x128xf32, #tpu.memory_space<vmem>>, vector<1x128xf32>
    %16 = vector.broadcast %15 : vector<1x128xf32> to vector<8x128xf32>
    %17 = arith.addf %14, %16 : vector<8x128xf32>
    %cst_12 = arith.constant 0.000000e+00 : f32
    %18 = vector.broadcast %cst_12 : f32 to vector<8x128xf32>
    %19 = arith.cmpf oge, %17, %18 : vector<8x128xf32>
    %cst_13 = arith.constant 9.99999974E-5 : f32
    %20 = vector.broadcast %cst_13 : f32 to vector<8x128xf32>
    %21 = arith.mulf %20, %17 : vector<8x128xf32>
    %22 = arith.select %19, %17, %21 : vector<8x128xi1>, vector<8x128xf32>
    %23 = arith.truncf %22 : vector<8x128xf32> to vector<8x128xbf16>
    %c1_14 = arith.constant 1 : index
    %c0_15 = arith.constant 0 : index
    %c0_16 = arith.constant 0 : index
    %24 = vector.load %arg3[%c1_14, %c0_15, %c0_16] : memref<5x128x128xbf16, #tpu.memory_space<vmem>>, vector<1x128x128xbf16>
    %25 = vector.shape_cast %24 : vector<1x128x128xbf16> to vector<128x128xbf16>
    %cst_17 = arith.constant dense<0.000000e+00> : vector<8x128xf32>
    %26 = tpu.matmul %23, %25, %cst_17 {dimension_numbers = #tpu.dot_dimension_numbers<[1], [0], [0], [1], [0, 0, 1, 1], [], []>} : vector<8x128xbf16>, vector<128x128xbf16>, vector<8x128xf32> -> vector<8x128xf32>
    %c2 = arith.constant 2 : index
    %c0_18 = arith.constant 0 : index
    %27 = vector.load %arg4[%c2, %c0_18] : memref<6x128xf32, #tpu.memory_space<vmem>>, vector<1x128xf32>
    %28 = vector.broadcast %27 : vector<1x128xf32> to vector<8x128xf32>
    %29 = arith.addf %26, %28 : vector<8x128xf32>
    %cst_19 = arith.constant 0.000000e+00 : f32
    %30 = vector.broadcast %cst_19 : f32 to vector<8x128xf32>
    %31 = arith.cmpf oge, %29, %30 : vector<8x128xf32>
    %cst_20 = arith.constant 9.99999974E-5 : f32
    %32 = vector.broadcast %cst_20 : f32 to vector<8x128xf32>
    %33 = arith.mulf %32, %29 : vector<8x128xf32>
    %34 = arith.select %31, %29, %33 : vector<8x128xi1>, vector<8x128xf32>
    %35 = arith.truncf %34 : vector<8x128xf32> to vector<8x128xbf16>
    %c2_21 = arith.constant 2 : index
    %c0_22 = arith.constant 0 : index
    %c0_23 = arith.constant 0 : index
    %36 = vector.load %arg3[%c2_21, %c0_22, %c0_23] : memref<5x128x128xbf16, #tpu.memory_space<vmem>>, vector<1x128x128xbf16>
    %37 = vector.shape_cast %36 : vector<1x128x128xbf16> to vector<128x128xbf16>
    %cst_24 = arith.constant dense<0.000000e+00> : vector<8x128xf32>
    %38 = tpu.matmul %35, %37, %cst_24 {dimension_numbers = #tpu.dot_dimension_numbers<[1], [0], [0], [1], [0, 0, 1, 1], [], []>} : vector<8x128xbf16>, vector<128x128xbf16>, vector<8x128xf32> -> vector<8x128xf32>
    %c3 = arith.constant 3 : index
    %c0_25 = arith.constant 0 : index
    %39 = vector.load %arg4[%c3, %c0_25] : memref<6x128xf32, #tpu.memory_space<vmem>>, vector<1x128xf32>
    %40 = vector.broadcast %39 : vector<1x128xf32> to vector<8x128xf32>
    %41 = arith.addf %38, %40 : vector<8x128xf32>
    %cst_26 = arith.constant 0.000000e+00 : f32
    %42 = vector.broadcast %cst_26 : f32 to vector<8x128xf32>
    %43 = arith.cmpf oge, %41, %42 : vector<8x128xf32>
    %cst_27 = arith.constant 9.99999974E-5 : f32
    %44 = vector.broadcast %cst_27 : f32 to vector<8x128xf32>
    %45 = arith.mulf %44, %41 : vector<8x128xf32>
    %46 = arith.select %43, %41, %45 : vector<8x128xi1>, vector<8x128xf32>
    %47 = arith.truncf %46 : vector<8x128xf32> to vector<8x128xbf16>
    %c3_28 = arith.constant 3 : index
    %c0_29 = arith.constant 0 : index
    %c0_30 = arith.constant 0 : index
    %48 = vector.load %arg3[%c3_28, %c0_29, %c0_30] : memref<5x128x128xbf16, #tpu.memory_space<vmem>>, vector<1x128x128xbf16>
    %49 = vector.shape_cast %48 : vector<1x128x128xbf16> to vector<128x128xbf16>
    %cst_31 = arith.constant dense<0.000000e+00> : vector<8x128xf32>
    %50 = tpu.matmul %47, %49, %cst_31 {dimension_numbers = #tpu.dot_dimension_numbers<[1], [0], [0], [1], [0, 0, 1, 1], [], []>} : vector<8x128xbf16>, vector<128x128xbf16>, vector<8x128xf32> -> vector<8x128xf32>
    %c4 = arith.constant 4 : index
    %c0_32 = arith.constant 0 : index
    %51 = vector.load %arg4[%c4, %c0_32] : memref<6x128xf32, #tpu.memory_space<vmem>>, vector<1x128xf32>
    %52 = vector.broadcast %51 : vector<1x128xf32> to vector<8x128xf32>
    %53 = arith.addf %50, %52 : vector<8x128xf32>
    %cst_33 = arith.constant 0.000000e+00 : f32
    %54 = vector.broadcast %cst_33 : f32 to vector<8x128xf32>
    %55 = arith.cmpf oge, %53, %54 : vector<8x128xf32>
    %cst_34 = arith.constant 9.99999974E-5 : f32
    %56 = vector.broadcast %cst_34 : f32 to vector<8x128xf32>
    %57 = arith.mulf %56, %53 : vector<8x128xf32>
    %58 = arith.select %55, %53, %57 : vector<8x128xi1>, vector<8x128xf32>
    %59 = arith.truncf %58 : vector<8x128xf32> to vector<8x128xbf16>
    %c4_35 = arith.constant 4 : index
    %c0_36 = arith.constant 0 : index
    %c0_37 = arith.constant 0 : index
    %60 = vector.load %arg3[%c4_35, %c0_36, %c0_37] : memref<5x128x128xbf16, #tpu.memory_space<vmem>>, vector<1x128x128xbf16>
    %61 = vector.shape_cast %60 : vector<1x128x128xbf16> to vector<128x128xbf16>
    %cst_38 = arith.constant dense<0.000000e+00> : vector<8x128xf32>
    %62 = tpu.matmul %59, %61, %cst_38 {dimension_numbers = #tpu.dot_dimension_numbers<[1], [0], [0], [1], [0, 0, 1, 1], [], []>} : vector<8x128xbf16>, vector<128x128xbf16>, vector<8x128xf32> -> vector<8x128xf32>
    %c5 = arith.constant 5 : index
    %c0_39 = arith.constant 0 : index
    %63 = vector.load %arg4[%c5, %c0_39] : memref<6x128xf32, #tpu.memory_space<vmem>>, vector<1x128xf32>
    %64 = vector.broadcast %63 : vector<1x128xf32> to vector<8x128xf32>
    %65 = arith.addf %62, %64 : vector<8x128xf32>
    %66 = arith.negf %65 : vector<8x128xf32>
    %67 = math.exp %66 : vector<8x128xf32>
    %cst_40 = arith.constant 1.000000e+00 : f32
    %68 = vector.broadcast %cst_40 : f32 to vector<8x128xf32>
    %69 = arith.addf %68, %67 : vector<8x128xf32>
    %70 = arith.divf %68, %69 : vector<8x128xf32>
    %c0_41 = arith.constant 0 : index
    %c0_42 = arith.constant 0 : index
    %71 = vector.load %arg5[%c0_41, %c0_42] : memref<8x128xf32, #tpu.memory_space<vmem>>, vector<8x128xf32>
    tpu.vector_store %arg5[%c0_41, %c0_42], %70 {strides = array<i32>} : memref<8x128xf32, #tpu.memory_space<vmem>>, vector<8x128xf32>,
    return
  }
  func.func @transform_0(%arg0: i32) -> (i32, i32) {
    %c0_i32 = arith.constant 0 : i32
    %c0_i32_0 = arith.constant 0 : i32
    return %arg0, %c0_i32 : i32, i32
  }
  func.func @transform_1(%arg0: i32) -> (i32, i32) {
    %c0_i32 = arith.constant 0 : i32
    %c0_i32_0 = arith.constant 0 : i32
    %c0_i32_1 = arith.constant 0 : i32
    return %c0_i32, %c0_i32_0 : i32, i32
  }
  func.func @transform_2(%arg0: i32) -> (i32, i32, i32) {
    %c0_i32 = arith.constant 0 : i32
    %c0_i32_0 = arith.constant 0 : i32
    %c0_i32_1 = arith.constant 0 : i32
    %c0_i32_2 = arith.constant 0 : i32
    return %c0_i32, %c0_i32_0, %c0_i32_1 : i32, i32, i32
  }
  func.func @transform_3(%arg0: i32) -> (i32, i32) {
    %c0_i32 = arith.constant 0 : i32
    %c0_i32_0 = arith.constant 0 : i32
    %c0_i32_1 = arith.constant 0 : i32
    return %c0_i32, %c0_i32_0 : i32, i32
  }
  func.func @transform_4(%arg0: i32) -> (i32, i32) {
    %c0_i32 = arith.constant 0 : i32
    %c0_i32_0 = arith.constant 0 : i32
    return %arg0, %c0_i32 : i32, i32
  }
}

</mosaic_0001>

<llo_original>
// kernel: tpu_custom_call.1
$region0: #{tpu_custom_call.1}
  #allocation0 [shape = 'u32[]', space=smem, size = 0x4, offset = 0x4, fixed_abs, tag = 'smem constant byte address 0x4 - core index']
  #allocation1 [shape = 'u32[72,128]{1,0:T(1,128)}', space=vmem, size = 0x9000, scoped, tag = 'internal scratch']
  %s0 = inlined_call_operand.hbm [shape: bf16[8,32], index: 0, kind: input, shape index: {}]
  %s1 = inlined_call_operand.hbm [shape: bf16[32,128], index: 1, kind: input, shape index: {}]
  %s2 = inlined_call_operand.hbm [shape: bf16[5,128,128], index: 2, kind: input, shape index: {}]
  %s3 = inlined_call_operand.hbm [shape: f32[6,128], index: 3, kind: input, shape index: {}]
  %s4 = inlined_call_operand.hbm [shape: f32[8,128], index: 4, kind: output, shape index: {}]
  %s5 = sld [smem:[#allocation0]]
  $region42: #{tpu_custom_call.1} parent=0
    _
  %s7 = ssub.s32 1, %s5
  %s8 = scalar_select 0, %s7, %s5
  $region1: #{tpu_custom_call.1} parent=0
    #allocation2 [shape = 'u8[2048]{0}', space=vmem, size = 0x800, scoped, tag = 'input window, operand 0, single buffered']
    #allocation3 [shape = 's32[1]{0}', space=sflag, size = 0x4, scoped, tag = 'scoped memory for tpu_custom_call.1']
    #allocation4 [shape = 's32[1]{0}', space=sflag, size = 0x4, scoped, tag = 'scoped memory for tpu_custom_call.1']
    #allocation5 [shape = 'u8[8192]{0}', space=vmem, size = 0x2000, scoped, tag = 'input window, operand 1, single buffered']
    #allocation6 [shape = 's32[1]{0}', space=sflag, size = 0x4, scoped, tag = 'scoped memory for tpu_custom_call.1']
    #allocation7 [shape = 'u8[163840]{0}', space=vmem, size = 0x28000, scoped, tag = 'input window, operand 2, single buffered']
    #allocation8 [shape = 'u8[4096]{0}', space=vmem, size = 0x1000, scoped, tag = 'input window, operand 3, single buffered']
    #allocation9 [shape = 's32[1]{0}', space=sflag, size = 0x4, scoped, tag = 'scoped memory for tpu_custom_call.1']
    #allocation10 [shape = 'u8[4096]{0}', space=vmem, size = 0x1000, scoped, tag = 'output window, operand 0, single buffered']
    %9 = vsyncpa [#allocation3], 0
    %10 = vsyncpa [#allocation6], 0
    %11 = vsyncpa [#allocation9], 0
    %12 = vsyncpa [#allocation4], 0
    // Predicated region
    $region2: #{tpu_custom_call.1} parent=1 // pred_check
      _
    $region3: #{tpu_custom_call.1} parent=1 // pred_check_branch
      %14 = sbr.rel (0) target = $region5
    $region4: #{tpu_custom_call.1} parent=1 // pred_region
      %16 = vsyncadd [#allocation3], 0
      %s18 = sshll.u32 %s0, 4
      %s19 = int_to_ptr.hbm [resolvable:$true] %s18
      %s20 = sshll.u32 [#allocation2], 4
      %s21 = int_to_ptr.vmem [resolvable:$true] %s20
      %23 = dma.hbm_to_vmem [thread:$0]  %s19, 64, %s21, [#allocation3]
    $region5: #{tpu_custom_call.1} parent=1 // pred_fallthru
      _
    // Predicated region
    $region6: #{tpu_custom_call.1} parent=1 // pred_check
      _
    $region7: #{tpu_custom_call.1} parent=1 // pred_check_branch
      %25 = sbr.rel (0) target = $region9
    $region8: #{tpu_custom_call.1} parent=1 // pred_region
      %27 = vsyncadd [#allocation6], 0
      %s28 = sshll.u32 %s1, 4
      %s29 = int_to_ptr.hbm [resolvable:$true] %s28
      %s30 = sshll.u32 [#allocation5], 4
      %s31 = int_to_ptr.vmem [resolvable:$true] %s30
      %36 = dma.hbm_to_vmem [thread:$0]  %s29, 256, %s31, [#allocation6], 64, 64, 4
    $region9: #{tpu_custom_call.1} parent=1 // pred_fallthru
      _
    // Predicated region
    $region10: #{tpu_custom_call.1} parent=1 // pred_check
      _
    $region11: #{tpu_custom_call.1} parent=1 // pred_check_branch
      %38 = sbr.rel (0) target = $region13
    $region12: #{tpu_custom_call.1} parent=1 // pred_region
      %40 = vsyncadd [#allocation6], 0
      %s41 = sshll.u32 %s2, 4
      %s42 = int_to_ptr.hbm [resolvable:$true] %s41
      %s43 = sshll.u32 [#allocation7], 4
      %s44 = int_to_ptr.vmem [resolvable:$true] %s43
      %49 = dma.hbm_to_vmem [thread:$0]  %s42, 5120, %s44, [#allocation6], 64, 64, 4
    $region13: #{tpu_custom_call.1} parent=1 // pred_fallthru
      _
    // Predicated region
    $region14: #{tpu_custom_call.1} parent=1 // pred_check
      _
    $region15: #{tpu_custom_call.1} parent=1 // pred_check_branch
      %51 = sbr.rel (0) target = $region17
    $region16: #{tpu_custom_call.1} parent=1 // pred_region
      %53 = vsyncadd [#allocation9], 0
      %s55 = sshll.u32 %s3, 4
      %s56 = int_to_ptr.hbm [resolvable:$true] %s55
      %s57 = sshll.u32 [#allocation8], 4
      %s58 = int_to_ptr.vmem [resolvable:$true] %s57
      %60 = dma.hbm_to_vmem [thread:$0]  %s56, 128, %s58, [#allocation9]
    $region17: #{tpu_custom_call.1} parent=1 // pred_fallthru
      _
    // Predicated region
    $region18: #{tpu_custom_call.1} parent=1 // pred_check
      _
    $region19: #{tpu_custom_call.1} parent=1 // pred_check_branch
      %62 = sbr.rel (0) target = $region21
    $region20: #{tpu_custom_call.1} parent=1 // pred_region
      %64 = dma.done [#allocation3], 64
    $region21: #{tpu_custom_call.1} parent=1 // pred_fallthru
      _
    // Predicated region
    $region22: #{tpu_custom_call.1} parent=1 // pred_check
      _
    $region23: #{tpu_custom_call.1} parent=1 // pred_check_branch
      %66 = sbr.rel (0) target = $region25
    $region24: #{tpu_custom_call.1} parent=1 // pred_region
      %68 = dma.done [#allocation6], 256
    $region25: #{tpu_custom_call.1} parent=1 // pred_fallthru
      _
    // Predicated region
    $region26: #{tpu_custom_call.1} parent=1 // pred_check
      _
    $region27: #{tpu_custom_call.1} parent=1 // pred_check_branch
      %70 = sbr.rel (0) target = $region29
    $region28: #{tpu_custom_call.1} parent=1 // pred_region
      %72 = dma.done [#allocation6], 5120
    $region29: #{tpu_custom_call.1} parent=1 // pred_fallthru
      _
    // Predicated region
    $region30: #{tpu_custom_call.1} parent=1 // pred_check
      _
    $region31: #{tpu_custom_call.1} parent=1 // pred_check_branch
      %74 = sbr.rel (0) target = $region33
    $region32: #{tpu_custom_call.1} parent=1 // pred_region
      %76 = dma.done [#allocation9], 128
    $region33: #{tpu_custom_call.1} parent=1 // pred_fallthru
      _
    %v78 = vld [vmem:[#allocation2] sm:$0xf]
    %v79 = vld [vmem:[#allocation5] sm:$0xf]
    %v80 = vld [vmem:[#allocation5 + $0x4] sm:$0xf]
    %v81 = vld [vmem:[#allocation5 + $0x8] sm:$0xf]
    %v82 = vld [vmem:[#allocation5 + $0xc] sm:$0xf]
    %v83 = vld [vmem:[#allocation8] sm:$0x1]
    %v84 = vperm.slane %v83, 0
    %v89 = vunpack.c.l.b16 %v79
    %v90 = vunpack.c.l.b16 %v80
    %v91 = vunpack.c.l.b16 %v81
    %v92 = vunpack.c.l.b16 %v82
    %v93 = vpack.c.b16 %v90, %v89
    %v94 = vpack.c.b16 %v92, %v91
    %vm97 = vcmask 261120
    %v99 = vsel %vm97, %v78, 0
    %101 = vmatpush.bf16.msra.mxu0 0
    %102 = vmatpush.bf16.msra.mxu0 0
    %103 = vmatpush.bf16.msra.mxu0 0
    %104 = vmatpush.bf16.msra.mxu0 0
    %105 = vmatpush.bf16.msra.mxu0 0
    %106 = vmatpush.bf16.msra.mxu0 0
    %107 = vmatpush.bf16.msra.mxu0 %v94
    %108 = vmatpush.bf16.msra.mxu0 %v93
    %109 = vmatmul.bf16.gmra.mxu0 %v99
    %v110 = vpop.f32.mrf.mxu0
    %v111 = vadd.f32 %v84, %v110
    %v112 = vpop.f32.mrf.mxu0
    %113 = vdwg.mxu0
    %vm114 = vcmp.ge.f32.partialorder %v111, 0.0
    %v115 = vmul.f32 %v111, 0.0001
    %v116 = vsel %vm114, %v111, %v115
    %v117 = vpack.c.bf16 %v116, %v116
    %v118 = vld [vmem:[#allocation7] sm:$0xf]
    %v119 = vld [vmem:[#allocation7 + $0x4] sm:$0xf]
    %v120 = vld [vmem:[#allocation7 + $0x8] sm:$0xf]
    %v121 = vld [vmem:[#allocation7 + $0xc] sm:$0xf]
    %v122 = vld [vmem:[#allocation7 + $0x10] sm:$0xf]
    %v123 = vld [vmem:[#allocation7 + $0x14] sm:$0xf]
    %v124 = vld [vmem:[#allocation7 + $0x18] sm:$0xf]
    %v125 = vld [vmem:[#allocation7 + $0x1c] sm:$0xf]
    %v126 = vld [vmem:[#allocation7 + $0x20] sm:$0xf]
    %v127 = vld [vmem:[#allocation7 + $0x24] sm:$0xf]
    %v128 = vld [vmem:[#allocation7 + $0x28] sm:$0xf]
    %v129 = vld [vmem:[#allocation7 + $0x2c] sm:$0xf]
    %v130 = vld [vmem:[#allocation7 + $0x30] sm:$0xf]
    %v131 = vld [vmem:[#allocation7 + $0x34] sm:$0xf]
    %v132 = vld [vmem:[#allocation7 + $0x38] sm:$0xf]
    %v133 = vld [vmem:[#allocation7 + $0x3c] sm:$0xf]
    %v134 = vld [vmem:[#allocation8 + $0x1] sm:$0x1]
    %v135 = vperm.slane %v134, 0
    %v152 = vunpack.c.l.b16 %v118
    %v153 = vunpack.c.l.b16 %v119
    %v154 = vunpack.c.l.b16 %v120
    %v155 = vunpack.c.l.b16 %v121
    %v156 = vunpack.c.l.b16 %v122
    %v157 = vunpack.c.l.b16 %v123
    %v158 = vunpack.c.l.b16 %v124
    %v159 = vunpack.c.l.b16 %v125
    %v160 = vunpack.c.l.b16 %v126
    %v161 = vunpack.c.l.b16 %v127
    %v162 = vunpack.c.l.b16 %v128
    %v163 = vunpack.c.l.b16 %v129
    %v164 = vunpack.c.l.b16 %v130
    %v165 = vunpack.c.l.b16 %v131
    %v166 = vunpack.c.l.b16 %v132
    %v167 = vunpack.c.l.b16 %v133
    %v168 = vpack.c.b16 %v153, %v152
    %v169 = vpack.c.b16 %v155, %v154
    %v170 = vpack.c.b16 %v157, %v156
    %v171 = vpack.c.b16 %v159, %v158
    %v172 = vpack.c.b16 %v161, %v160
    %v173 = vpack.c.b16 %v163, %v162
    %v174 = vpack.c.b16 %v165, %v164
    %v175 = vpack.c.b16 %v167, %v166
    %184 = vmatpush.bf16.msra.mxu0 %v175
    %185 = vmatpush.bf16.msra.mxu0 %v174
    %186 = vmatpush.bf16.msra.mxu0 %v173
    %187 = vmatpush.bf16.msra.mxu0 %v172
    %188 = vmatpush.bf16.msra.mxu0 %v171
    %189 = vmatpush.bf16.msra.mxu0 %v170
    %190 = vmatpush.bf16.msra.mxu0 %v169
    %191 = vmatpush.bf16.msra.mxu0 %v168
    %192 = vmatmul.bf16.gmra.mxu0 %v117
    %v193 = vpop.f32.mrf.mxu0
    %v194 = vadd.f32 %v135, %v193
    %v195 = vpop.f32.mrf.mxu0
    %196 = vdwg.mxu0
    %vm197 = vcmp.ge.f32.partialorder %v194, 0.0
    %v198 = vmul.f32 %v194, 0.0001
    %v199 = vsel %vm197, %v194, %v198
    %v200 = vpack.c.bf16 %v199, %v199
    %s201 = scalar_lea.vmem [#allocation7], 64
    %v202 = vld [vmem:[%s201] sm:$0xf]
    %v203 = vld [vmem:[%s201 + $0x4] sm:$0xf]
    %v204 = vld [vmem:[%s201 + $0x8] sm:$0xf]
    %v205 = vld [vmem:[%s201 + $0xc] sm:$0xf]
    %v206 = vld [vmem:[%s201 + $0x10] sm:$0xf]
    %v207 = vld [vmem:[%s201 + $0x14] sm:$0xf]
    %v208 = vld [vmem:[%s201 + $0x18] sm:$0xf]
    %v209 = vld [vmem:[%s201 + $0x1c] sm:$0xf]
    %v210 = vld [vmem:[%s201 + $0x20] sm:$0xf]
    %v211 = vld [vmem:[%s201 + $0x24] sm:$0xf]
    %v212 = vld [vmem:[%s201 + $0x28] sm:$0xf]
    %v213 = vld [vmem:[%s201 + $0x2c] sm:$0xf]
    %v214 = vld [vmem:[%s201 + $0x30] sm:$0xf]
    %v215 = vld [vmem:[%s201 + $0x34] sm:$0xf]
    %v216 = vld [vmem:[%s201 + $0x38] sm:$0xf]
    %v217 = vld [vmem:[%s201 + $0x3c] sm:$0xf]
    %v218 = vld [vmem:[#allocation8 + $0x2] sm:$0x1]
    %v219 = vperm.slane %v218, 0
    %v236 = vunpack.c.l.b16 %v202
    %v237 = vunpack.c.l.b16 %v203
    %v238 = vunpack.c.l.b16 %v204
    %v239 = vunpack.c.l.b16 %v205
    %v240 = vunpack.c.l.b16 %v206
    %v241 = vunpack.c.l.b16 %v207
    %v242 = vunpack.c.l.b16 %v208
    %v243 = vunpack.c.l.b16 %v209
    %v244 = vunpack.c.l.b16 %v210
    %v245 = vunpack.c.l.b16 %v211
    %v246 = vunpack.c.l.b16 %v212
    %v247 = vunpack.c.l.b16 %v213
    %v248 = vunpack.c.l.b16 %v214
    %v249 = vunpack.c.l.b16 %v215
    %v250 = vunpack.c.l.b16 %v216
    %v251 = vunpack.c.l.b16 %v217
    %v252 = vpack.c.b16 %v237, %v236
    %v253 = vpack.c.b16 %v239, %v238
    %v254 = vpack.c.b16 %v241, %v240
    %v255 = vpack.c.b16 %v243, %v242
    %v256 = vpack.c.b16 %v245, %v244
    %v257 = vpack.c.b16 %v247, %v246
    %v258 = vpack.c.b16 %v249, %v248
    %v259 = vpack.c.b16 %v251, %v250
    %268 = vmatpush.bf16.msra.mxu0 %v259
    %269 = vmatpush.bf16.msra.mxu0 %v258
    %270 = vmatpush.bf16.msra.mxu0 %v257
    %271 = vmatpush.bf16.msra.mxu0 %v256
    %272 = vmatpush.bf16.msra.mxu0 %v255
    %273 = vmatpush.bf16.msra.mxu0 %v254
    %274 = vmatpush.bf16.msra.mxu0 %v253
    %275 = vmatpush.bf16.msra.mxu0 %v252
    %276 = vmatmul.bf16.gmra.mxu0 %v200
    %v277 = vpop.f32.mrf.mxu0
    %v278 = vadd.f32 %v219, %v277
    %v279 = vpop.f32.mrf.mxu0
    %280 = vdwg.mxu0
    %vm281 = vcmp.ge.f32.partialorder %v278, 0.0
    %v282 = vmul.f32 %v278, 0.0001
    %v283 = vsel %vm281, %v278, %v282
    %v284 = vpack.c.bf16 %v283, %v283
    %s285 = scalar_lea.vmem [#allocation7], 128
    %v286 = vld [vmem:[%s285] sm:$0xf]
    %v287 = vld [vmem:[%s285 + $0x4] sm:$0xf]
    %v288 = vld [vmem:[%s285 + $0x8] sm:$0xf]
    %v289 = vld [vmem:[%s285 + $0xc] sm:$0xf]
    %v290 = vld [vmem:[%s285 + $0x10] sm:$0xf]
    %v291 = vld [vmem:[%s285 + $0x14] sm:$0xf]
    %v292 = vld [vmem:[%s285 + $0x18] sm:$0xf]
    %v293 = vld [vmem:[%s285 + $0x1c] sm:$0xf]
    %v294 = vld [vmem:[%s285 + $0x20] sm:$0xf]
    %v295 = vld [vmem:[%s285 + $0x24] sm:$0xf]
    %v296 = vld [vmem:[%s285 + $0x28] sm:$0xf]
    %v297 = vld [vmem:[%s285 + $0x2c] sm:$0xf]
    %v298 = vld [vmem:[%s285 + $0x30] sm:$0xf]
    %v299 = vld [vmem:[%s285 + $0x34] sm:$0xf]
    %v300 = vld [vmem:[%s285 + $0x38] sm:$0xf]
    %v301 = vld [vmem:[%s285 + $0x3c] sm:$0xf]
    %v302 = vld [vmem:[#allocation8 + $0x3] sm:$0x1]
    %v303 = vperm.slane %v302, 0
    %v320 = vunpack.c.l.b16 %v286
    %v321 = vunpack.c.l.b16 %v287
    %v322 = vunpack.c.l.b16 %v288
    %v323 = vunpack.c.l.b16 %v289
    %v324 = vunpack.c.l.b16 %v290
    %v325 = vunpack.c.l.b16 %v291
    %v326 = vunpack.c.l.b16 %v292
    %v327 = vunpack.c.l.b16 %v293
    %v328 = vunpack.c.l.b16 %v294
    %v329 = vunpack.c.l.b16 %v295
    %v330 = vunpack.c.l.b16 %v296
    %v331 = vunpack.c.l.b16 %v297
    %v332 = vunpack.c.l.b16 %v298
    %v333 = vunpack.c.l.b16 %v299
    %v334 = vunpack.c.l.b16 %v300
    %v335 = vunpack.c.l.b16 %v301
    %v336 = vpack.c.b16 %v321, %v320
    %v337 = vpack.c.b16 %v323, %v322
    %v338 = vpack.c.b16 %v325, %v324
    %v339 = vpack.c.b16 %v327, %v326
    %v340 = vpack.c.b16 %v329, %v328
    %v341 = vpack.c.b16 %v331, %v330
    %v342 = vpack.c.b16 %v333, %v332
    %v343 = vpack.c.b16 %v335, %v334
    %352 = vmatpush.bf16.msra.mxu0 %v343
    %353 = vmatpush.bf16.msra.mxu0 %v342
    %354 = vmatpush.bf16.msra.mxu0 %v341
    %355 = vmatpush.bf16.msra.mxu0 %v340
    %356 = vmatpush.bf16.msra.mxu0 %v339
    %357 = vmatpush.bf16.msra.mxu0 %v338
    %358 = vmatpush.bf16.msra.mxu0 %v337
    %359 = vmatpush.bf16.msra.mxu0 %v336
    %360 = vmatmul.bf16.gmra.mxu0 %v284
    %v361 = vpop.f32.mrf.mxu0
    %v362 = vadd.f32 %v303, %v361
    %v363 = vpop.f32.mrf.mxu0
    %364 = vdwg.mxu0
    %vm365 = vcmp.ge.f32.partialorder %v362, 0.0
    %v366 = vmul.f32 %v362, 0.0001
    %v367 = vsel %vm365, %v362, %v366
    %v368 = vpack.c.bf16 %v367, %v367
    %s369 = scalar_lea.vmem [#allocation7], 192
    %v370 = vld [vmem:[%s369] sm:$0xf]
    %v371 = vld [vmem:[%s369 + $0x4] sm:$0xf]
    %v372 = vld [vmem:[%s369 + $0x8] sm:$0xf]
    %v373 = vld [vmem:[%s369 + $0xc] sm:$0xf]
    %v374 = vld [vmem:[%s369 + $0x10] sm:$0xf]
    %v375 = vld [vmem:[%s369 + $0x14] sm:$0xf]
    %v376 = vld [vmem:[%s369 + $0x18] sm:$0xf]
    %v377 = vld [vmem:[%s369 + $0x1c] sm:$0xf]
    %v378 = vld [vmem:[%s369 + $0x20] sm:$0xf]
    %v379 = vld [vmem:[%s369 + $0x24] sm:$0xf]
    %v380 = vld [vmem:[%s369 + $0x28] sm:$0xf]
    %v381 = vld [vmem:[%s369 + $0x2c] sm:$0xf]
    %v382 = vld [vmem:[%s369 + $0x30] sm:$0xf]
    %v383 = vld [vmem:[%s369 + $0x34] sm:$0xf]
    %v384 = vld [vmem:[%s369 + $0x38] sm:$0xf]
    %v385 = vld [vmem:[%s369 + $0x3c] sm:$0xf]
    %v386 = vld [vmem:[#allocation8 + $0x4] sm:$0x1]
    %v387 = vperm.slane %v386, 0
    %v404 = vunpack.c.l.b16 %v370
    %v405 = vunpack.c.l.b16 %v371
    %v406 = vunpack.c.l.b16 %v372
    %v407 = vunpack.c.l.b16 %v373
    %v408 = vunpack.c.l.b16 %v374
    %v409 = vunpack.c.l.b16 %v375
    %v410 = vunpack.c.l.b16 %v376
    %v411 = vunpack.c.l.b16 %v377
    %v412 = vunpack.c.l.b16 %v378
    %v413 = vunpack.c.l.b16 %v379
    %v414 = vunpack.c.l.b16 %v380
    %v415 = vunpack.c.l.b16 %v381
    %v416 = vunpack.c.l.b16 %v382
    %v417 = vunpack.c.l.b16 %v383
    %v418 = vunpack.c.l.b16 %v384
    %v419 = vunpack.c.l.b16 %v385
    %v420 = vpack.c.b16 %v405, %v404
    %v421 = vpack.c.b16 %v407, %v406
    %v422 = vpack.c.b16 %v409, %v408
    %v423 = vpack.c.b16 %v411, %v410
    %v424 = vpack.c.b16 %v413, %v412
    %v425 = vpack.c.b16 %v415, %v414
    %v426 = vpack.c.b16 %v417, %v416
    %v427 = vpack.c.b16 %v419, %v418
    %436 = vmatpush.bf16.msra.mxu0 %v427
    %437 = vmatpush.bf16.msra.mxu0 %v426
    %438 = vmatpush.bf16.msra.mxu0 %v425
    %439 = vmatpush.bf16.msra.mxu0 %v424
    %440 = vmatpush.bf16.msra.mxu0 %v423
    %441 = vmatpush.bf16.msra.mxu0 %v422
    %442 = vmatpush.bf16.msra.mxu0 %v421
    %443 = vmatpush.bf16.msra.mxu0 %v420
    %444 = vmatmul.bf16.gmra.mxu0 %v368
    %v445 = vpop.f32.mrf.mxu0
    %v446 = vadd.f32 %v387, %v445
    %v447 = vpop.f32.mrf.mxu0
    %448 = vdwg.mxu0
    %vm449 = vcmp.ge.f32.partialorder %v446, 0.0
    %v450 = vmul.f32 %v446, 0.0001
    %v451 = vsel %vm449, %v446, %v450
    %v452 = vpack.c.bf16 %v451, %v451
    %s453 = scalar_lea.vmem [#allocation7], 256
    %v454 = vld [vmem:[%s453] sm:$0xf]
    %v455 = vld [vmem:[%s453 + $0x4] sm:$0xf]
    %v456 = vld [vmem:[%s453 + $0x8] sm:$0xf]
    %v457 = vld [vmem:[%s453 + $0xc] sm:$0xf]
    %v458 = vld [vmem:[%s453 + $0x10] sm:$0xf]
    %v459 = vld [vmem:[%s453 + $0x14] sm:$0xf]
    %v460 = vld [vmem:[%s453 + $0x18] sm:$0xf]
    %v461 = vld [vmem:[%s453 + $0x1c] sm:$0xf]
    %v462 = vld [vmem:[%s453 + $0x20] sm:$0xf]
    %v463 = vld [vmem:[%s453 + $0x24] sm:$0xf]
    %v464 = vld [vmem:[%s453 + $0x28] sm:$0xf]
    %v465 = vld [vmem:[%s453 + $0x2c] sm:$0xf]
    %v466 = vld [vmem:[%s453 + $0x30] sm:$0xf]
    %v467 = vld [vmem:[%s453 + $0x34] sm:$0xf]
    %v468 = vld [vmem:[%s453 + $0x38] sm:$0xf]
    %v469 = vld [vmem:[%s453 + $0x3c] sm:$0xf]
    %v470 = vld [vmem:[#allocation8 + $0x5] sm:$0x1]
    %v471 = vperm.slane %v470, 0
    %v488 = vunpack.c.l.b16 %v454
    %v489 = vunpack.c.l.b16 %v455
    %v490 = vunpack.c.l.b16 %v456
    %v491 = vunpack.c.l.b16 %v457
    %v492 = vunpack.c.l.b16 %v458
    %v493 = vunpack.c.l.b16 %v459
    %v494 = vunpack.c.l.b16 %v460
    %v495 = vunpack.c.l.b16 %v461
    %v496 = vunpack.c.l.b16 %v462
    %v497 = vunpack.c.l.b16 %v463
    %v498 = vunpack.c.l.b16 %v464
    %v499 = vunpack.c.l.b16 %v465
    %v500 = vunpack.c.l.b16 %v466
    %v501 = vunpack.c.l.b16 %v467
    %v502 = vunpack.c.l.b16 %v468
    %v503 = vunpack.c.l.b16 %v469
    %v504 = vpack.c.b16 %v489, %v488
    %v505 = vpack.c.b16 %v491, %v490
    %v506 = vpack.c.b16 %v493, %v492
    %v507 = vpack.c.b16 %v495, %v494
    %v508 = vpack.c.b16 %v497, %v496
    %v509 = vpack.c.b16 %v499, %v498
    %v510 = vpack.c.b16 %v501, %v500
    %v511 = vpack.c.b16 %v503, %v502
    %520 = vmatpush.bf16.msra.mxu0 %v511
    %521 = vmatpush.bf16.msra.mxu0 %v510
    %522 = vmatpush.bf16.msra.mxu0 %v509
    %523 = vmatpush.bf16.msra.mxu0 %v508
    %524 = vmatpush.bf16.msra.mxu0 %v507
    %525 = vmatpush.bf16.msra.mxu0 %v506
    %526 = vmatpush.bf16.msra.mxu0 %v505
    %527 = vmatpush.bf16.msra.mxu0 %v504
    %528 = vmatmul.bf16.gmra.mxu0 %v452
    %v529 = vpop.f32.mrf.mxu0
    %v530 = vadd.f32 %v471, %v529
    %v531 = vpop.f32.mrf.mxu0
    %532 = vdwg.mxu0
    %v533 = vxor.u32 %v530, 2147483648
    %v534 = vmul.f32 %v533, 1.442695
    %v535 = vpow.pop %v534
    %v536 = vadd.f32 %v535, 1.0
    %v537 = vrcp.pop %v536
    %v538 = vmul.f32 %v536, %v537
    %v539 = vsub.f32 1.0, %v538
    %v540 = vmul.f32 %v537, %v539
    %v541 = vadd.f32 %v537, %v540
    %vm542 = vweird.f32 %v536
    %vm543 = vweird.f32 %v537
    %vm544 = vmor %vm542, %vm543
    %v545 = vsel %vm544, %v537, %v541
    %v546 = vand.u32 2147483647, %v536
    %vm547 = vcmp.eq.f32.partialorder %v546, 8.507059e+37
    %v548 = vand.u32 %v536, 2147483648
    %v549 = vor.u32 1.1754944e-38, %v548
    %v550 = vsel %vm547, %v549, %v545
    %v551 = vmul.f32 1.0, %v550
    %552 = vst [vmem:[#allocation10] sm:$0xff] %v551
    // Predicated region
    $region34: #{tpu_custom_call.1} parent=1 // pred_check
      _
    $region35: #{tpu_custom_call.1} parent=1 // pred_check_branch
      %554 = sbr.rel (0) target = $region37
    $region36: #{tpu_custom_call.1} parent=1 // pred_region
      %556 = vsyncadd [#allocation4], 0
      %s558 = sshll.u32 [#allocation10], 4
      %s559 = int_to_ptr.vmem [resolvable:$true] %s558
      %s560 = sshll.u32 %s4, 4
      %s561 = int_to_ptr.hbm [resolvable:$true] %s560
      %563 = dma.vmem_to_hbm [thread:$0]  %s559, 128, %s561, [#allocation4]
    $region37: #{tpu_custom_call.1} parent=1 // pred_fallthru
      _
    // Predicated region
    $region38: #{tpu_custom_call.1} parent=1 // pred_check
      _
    $region39: #{tpu_custom_call.1} parent=1 // pred_check_branch
      %565 = sbr.rel (0) target = $region41
    $region40: #{tpu_custom_call.1} parent=1 // pred_region
      %567 = dma.done [#allocation4], 128
    $region41: #{tpu_custom_call.1} parent=1 // pred_fallthru
      _
    %568 = vsyncpa [#allocation3], 1
    %569 = vsyncpa [#allocation6], 1
    %570 = vsyncpa [#allocation9], 1
    %571 = vsyncpa [#allocation4], 1

</llo_original>
